<compile_context>
chip_gen: v7x
topology: tpu7x:2x2x1
jax: 0.10.0
libtpu: 0.0.40
codegen_flags: <defaults>
</compile_context>

<pallas_src>
import functools
import math

import jax
import jax.numpy as jnp
from jax import lax
from jax.experimental import pallas as pl
from jax.experimental.pallas import tpu as pltpu


_TARGET_BLOCK_BYTES = 512 * 1024         # aim for ~0.5 MiB gathered per grid step
_VMEM_BUDGET_BYTES = 24 * 1024 * 1024    # sizing budget (safe incl. v7x 64 MiB VMEM)
_VMEM_TABLE_MAX_BYTES = 8 * 1024 * 1024  # table <= this -> VMEM-resident fast path
_VMEM_LIMIT_BYTES = 32 * 1024 * 1024     # scoped-VMEM limit requested from Mosaic
_MAX_TOK_BLOCK = 1024
_STATIC_UNROLL_MAX = 64                  # static Python unroll up to this many rows


def _round_up(n: int, m: int) -> int:
    return ((n + m - 1) // m) * m


def _choose_tok_block(num_tokens, d_model, itemsize, table_in_vmem, table_bytes):
    row_bytes = d_model * itemsize
    target = max(1, _TARGET_BLOCK_BYTES // row_bytes)
    if table_in_vmem:
        # VMEM: (possibly double-buffered) table + double-buffered output block.
        avail = max(row_bytes, _VMEM_BUDGET_BYTES - 2 * table_bytes)
        cap = max(1, avail // (2 * row_bytes))
    else:
        # VMEM: 2x gather scratch + 2x Pallas-double-buffered output block.
        cap = max(1, _VMEM_BUDGET_BYTES // (4 * row_bytes))
    tb = min(target, cap, _MAX_TOK_BLOCK)
    n8 = _round_up(max(num_tokens, 1), 8)
    tb = min(tb, n8)
    if n8 >= 16:
        tb = min(tb, n8 // 2)   # keep >= 2 grid blocks (v7x: 2 TensorCores)
    return max(8, (int(tb) // 8) * 8)


def _row_loop(n_rows, body_fn):
    """body_fn(t) for t in [0, n_rows): static unroll if small, fori_loop else."""
    if n_rows <= _STATIC_UNROLL_MAX:
        for t in range(n_rows):
            body_fn(t)
    else:
        def body(t, carry):
            body_fn(t)
            return carry
        lax.fori_loop(0, n_rows, body, 0)


# --------------------------- Path A: VMEM-resident table ---------------------
def _vmem_table_kernel(ids_ref, table_ref, o_ref, *, tok_block, scale):
    base = pl.program_id(0) * tok_block
    scale_v = jnp.asarray(scale, dtype=o_ref.dtype)   # native-dtype scaling

    def gather_row(t):
        tok = ids_ref[base + t]                        # scalar read from SMEM
        o_ref[t, :] = table_ref[tok, :] * scale_v      # in-VMEM gather + scale

    _row_loop(tok_block, gather_row)


# --------------------------- Path B: HBM gather, double-buffered -------------
def _hbm_gather_kernel(ids_ref, table_ref, o_ref, buf_ref, sem_ref, *,
                       tok_block, scale):
    i = pl.program_id(0)

    def issue_block(block_idx, slot):
        base = block_idx * tok_block

        def issue_row(t):
            tok = ids_ref[base + t]                    # ids already in SMEM
            pltpu.make_async_copy(
                table_ref.at[pl.ds(tok, 1), :],        # (1, d_model) row in HBM
                buf_ref.at[slot, pl.ds(t, 1), :],      # (1, d_model) slot in VMEM
                sem_ref.at[slot],
            ).start()

        _row_loop(tok_block, issue_row)

    # Prime the pipeline: block 0 -> slot 0 (first grid step only).
    @pl.when(i == 0)
    def _():
        issue_block(0, 0)

    # Prefetch next block into the other slot BEFORE waiting on this one.
    @pl.when(i + 1 < pl.num_programs(0))
    def _():
        issue_block(i + 1, (i + 1) & 1)

    slot = i & 1
    # One per-slot wait: every row copy has identical byte count, so a single
    # descriptor sized like the whole slot consumes all completions for it.
    pltpu.make_async_copy(
        table_ref.at[pl.ds(0, tok_block), :],
        buf_ref.at[slot],
        sem_ref.at[slot],
    ).wait()

    scale_v = jnp.asarray(scale, dtype=o_ref.dtype)
    o_ref[...] = buf_ref[slot] * scale_v


# --------------------------- Wrapper ----------------------------------------
def input_embeddings(ids, table, *, tok_block=None, force_hbm_gather=False):
    """ids: int array of any shape; table: (vocab_size, d_model) float array.

    Returns table[ids] * sqrt(d_model) with shape ids.shape + (d_model,).
    Precondition: 0 <= ids < vocab_size (as for nn.Embedding).
    """
    vocab_size, d_model = table.shape
    itemsize = jnp.dtype(table.dtype).itemsize
    table_bytes = vocab_size * d_model * itemsize
    scale = math.sqrt(d_model)

    ids_flat = ids.reshape(-1).astype(jnp.int32)
    num_tokens = int(ids_flat.shape[0])

    table_in_vmem = (not force_hbm_gather) and (table_bytes <= _VMEM_TABLE_MAX_BYTES)

    if tok_block is None:
        tok_block = _choose_tok_block(num_tokens, d_model, itemsize,
                                      table_in_vmem, table_bytes)
    tok_block = max(8, (int(tok_block) // 8) * 8)
    if not table_in_vmem:
        # HBM path waits with a (tok_block, d_model) table-shaped descriptor;
        # keep it constructible (always true for tables too large for VMEM).
        tok_block = min(tok_block, max(8, (vocab_size // 8) * 8))

    padded = _round_up(max(num_tokens, 1), tok_block)
    if padded != num_tokens:
        # Pad with id 0 (always in bounds); padded rows are sliced off below.
        ids_flat = jnp.pad(ids_flat, (0, padded - num_tokens))
    grid = (padded // tok_block,)

    out_spec = pl.BlockSpec((tok_block, d_model), lambda i, ids_smem: (i, 0))

    if table_in_vmem:
        kernel = functools.partial(_vmem_table_kernel,
                                   tok_block=tok_block, scale=scale)
        in_specs = [pl.BlockSpec((vocab_size, d_model),
                                 lambda i, ids_smem: (0, 0))]   # whole table, VMEM
        scratch_shapes = []
        dim_sem = ("parallel",)
    else:
        kernel = functools.partial(_hbm_gather_kernel,
                                   tok_block=tok_block, scale=scale)
        in_specs = [pl.BlockSpec(memory_space=pl.ANY)]          # table stays in HBM
        scratch_shapes = [
            pltpu.VMEM((2, tok_block, d_model), table.dtype),   # double buffer
            pltpu.SemaphoreType.DMA((2,)),                      # one sem per slot
        ]
        # Cross-grid-step prefetch carries state in scratch -> sequential order.
        dim_sem = ("arbitrary",)

    out = pl.pallas_call(
        kernel,
        out_shape=jax.ShapeDtypeStruct((padded, d_model), table.dtype),
        grid_spec=pltpu.PrefetchScalarGridSpec(
            num_scalar_prefetch=1,          # ids -> SMEM
            grid=grid,
            in_specs=in_specs,
            out_specs=out_spec,
            scratch_shapes=scratch_shapes,
        ),
        compiler_params=pltpu.CompilerParams(
            dimension_semantics=dim_sem,
            vmem_limit_bytes=_VMEM_LIMIT_BYTES,
        ),
    )(ids_flat, table)

    if padded != num_tokens:
        out = out[:num_tokens]
    return out.reshape(*ids.shape, d_model)


if __name__ == "__main__":
    key = jax.random.PRNGKey(0)
    k_ids_a, k_tbl_a, k_ids_b, k_tbl_b = jax.random.split(key, 4)

    batch, seq = 2, 8

    # --- Small-table fast path (VMEM-resident table) -------------------------
    vocab_a, dm_a = 32, 128
    ids_a = jax.random.randint(k_ids_a, (batch, seq), 0, vocab_a, dtype=jnp.int32)
    tbl_a = jax.random.normal(k_tbl_a, (vocab_a, dm_a), dtype=jnp.float32)

    y_a = jax.block_until_ready(input_embeddings(ids_a, tbl_a))
    ref_a = jnp.take(tbl_a, ids_a, axis=0) * math.sqrt(dm_a)
    assert y_a.shape == (batch, seq, dm_a)
    assert jnp.allclose(y_a, ref_a, atol=1e-5, rtol=1e-5), "VMEM-table path mismatch"

    # --- HBM-gather path (manual double-buffered row DMAs) -------------------
    vocab_b, dm_b = 512, 256
    ids_b = jax.random.randint(k_ids_b, (batch, seq), 0, vocab_b, dtype=jnp.int32)
    tbl_b = jax.random.normal(k_tbl_b, (vocab_b, dm_b), dtype=jnp.float32)

    y_b = jax.block_until_ready(
        input_embeddings(ids_b, tbl_b, force_hbm_gather=True))
    ref_b = jnp.take(tbl_b, ids_b, axis=0) * math.sqrt(dm_b)
    assert y_b.shape == (batch, seq, dm_b)
    assert jnp.allclose(y_b, ref_b, atol=1e-5, rtol=1e-5), "HBM-gather path mismatch"

    print("KERNEL_OK")
</pallas_src>

<mosaic_0001>
module attributes {stable_mosaic.version = 11 : i64} {
  func.func @_vmem_table_kernel(%arg0: i32, %arg1: memref<16xi32, #tpu.memory_space<smem>>, %arg2: memref<32x128xf32, #tpu.memory_space<vmem>>, %arg3: memref<8x128xf32, #tpu.memory_space<vmem>>) attributes {dimension_semantics = [#tpu.dimension_semantics<parallel>], iteration_bounds = array<i64: 2>, scalar_prefetch = 1 : i64, scratch_operands = 0 : i64, tpu.core_type = #tpu.core_type<tc>, window_params = [{pipeline_mode = #tpu.pipeline_mode<synchronous>, transform_indices = @transform_0, window_bounds = array<i64: 32, 128>}, {transform_indices = @transform_1, window_bounds = array<i64: 8, 128>}]} {
    %c8_i32 = arith.constant 8 : i32
    %0 = arith.muli %arg0, %c8_i32 : i32
    %c0_i32 = arith.constant 0 : i32
    %1 = arith.addi %0, %c0_i32 : i32
    %2 = arith.index_cast %1 : i32 to index
    %3 = memref.load %arg1[%2] : memref<16xi32, #tpu.memory_space<smem>>
    %4 = arith.index_cast %3 : i32 to index
    %c0 = arith.constant 0 : index
    %5 = vector.load %arg2[%4, %c0] : memref<32x128xf32, #tpu.memory_space<vmem>>, vector<1x128xf32>
    %6 = vector.shape_cast %5 : vector<1x128xf32> to vector<128xf32>
    %cst = arith.constant 11.3137083 : f32
    %7 = vector.broadcast %cst : f32 to vector<128xf32>
    %8 = arith.mulf %6, %7 : vector<128xf32>
    %c0_0 = arith.constant 0 : index
    %c0_1 = arith.constant 0 : index
    %9 = vector.load %arg3[%c0_0, %c0_1] : memref<8x128xf32, #tpu.memory_space<vmem>>, vector<1x128xf32>
    %10 = vector.shape_cast %9 : vector<1x128xf32> to vector<128xf32>
    %11 = vector.shape_cast %8 : vector<128xf32> to vector<1x128xf32>
    tpu.vector_store %arg3[%c0_0, %c0_1], %11 {strides = array<i32>} : memref<8x128xf32, #tpu.memory_space<vmem>>, vector<1x128xf32>,
    %c1_i32 = arith.constant 1 : i32
    %12 = arith.addi %0, %c1_i32 : i32
    %13 = arith.index_cast %12 : i32 to index
    %14 = memref.load %arg1[%13] : memref<16xi32, #tpu.memory_space<smem>>
    %15 = arith.index_cast %14 : i32 to index
    %c0_2 = arith.constant 0 : index
    %16 = vector.load %arg2[%15, %c0_2] : memref<32x128xf32, #tpu.memory_space<vmem>>, vector<1x128xf32>
    %17 = vector.shape_cast %16 : vector<1x128xf32> to vector<128xf32>
    %cst_3 = arith.constant 11.3137083 : f32
    %18 = vector.broadcast %cst_3 : f32 to vector<128xf32>
    %19 = arith.mulf %17, %18 : vector<128xf32>
    %c1 = arith.constant 1 : index
    %c0_4 = arith.constant 0 : index
    %20 = vector.load %arg3[%c1, %c0_4] : memref<8x128xf32, #tpu.memory_space<vmem>>, vector<1x128xf32>
    %21 = vector.shape_cast %20 : vector<1x128xf32> to vector<128xf32>
    %22 = vector.shape_cast %19 : vector<128xf32> to vector<1x128xf32>
    tpu.vector_store %arg3[%c1, %c0_4], %22 {strides = array<i32>} : memref<8x128xf32, #tpu.memory_space<vmem>>, vector<1x128xf32>,
    %c2_i32 = arith.constant 2 : i32
    %23 = arith.addi %0, %c2_i32 : i32
    %24 = arith.index_cast %23 : i32 to index
    %25 = memref.load %arg1[%24] : memref<16xi32, #tpu.memory_space<smem>>
    %26 = arith.index_cast %25 : i32 to index
    %c0_5 = arith.constant 0 : index
    %27 = vector.load %arg2[%26, %c0_5] : memref<32x128xf32, #tpu.memory_space<vmem>>, vector<1x128xf32>
    %28 = vector.shape_cast %27 : vector<1x128xf32> to vector<128xf32>
    %cst_6 = arith.constant 11.3137083 : f32
    %29 = vector.broadcast %cst_6 : f32 to vector<128xf32>
    %30 = arith.mulf %28, %29 : vector<128xf32>
    %c2 = arith.constant 2 : index
    %c0_7 = arith.constant 0 : index
    %31 = vector.load %arg3[%c2, %c0_7] : memref<8x128xf32, #tpu.memory_space<vmem>>, vector<1x128xf32>
    %32 = vector.shape_cast %31 : vector<1x128xf32> to vector<128xf32>
    %33 = vector.shape_cast %30 : vector<128xf32> to vector<1x128xf32>
    tpu.vector_store %arg3[%c2, %c0_7], %33 {strides = array<i32>} : memref<8x128xf32, #tpu.memory_space<vmem>>, vector<1x128xf32>,
    %c3_i32 = arith.constant 3 : i32
    %34 = arith.addi %0, %c3_i32 : i32
    %35 = arith.index_cast %34 : i32 to index
    %36 = memref.load %arg1[%35] : memref<16xi32, #tpu.memory_space<smem>>
    %37 = arith.index_cast %36 : i32 to index
    %c0_8 = arith.constant 0 : index
    %38 = vector.load %arg2[%37, %c0_8] : memref<32x128xf32, #tpu.memory_space<vmem>>, vector<1x128xf32>
    %39 = vector.shape_cast %38 : vector<1x128xf32> to vector<128xf32>
    %cst_9 = arith.constant 11.3137083 : f32
    %40 = vector.broadcast %cst_9 : f32 to vector<128xf32>
    %41 = arith.mulf %39, %40 : vector<128xf32>
    %c3 = arith.constant 3 : index
    %c0_10 = arith.constant 0 : index
    %42 = vector.load %arg3[%c3, %c0_10] : memref<8x128xf32, #tpu.memory_space<vmem>>, vector<1x128xf32>
    %43 = vector.shape_cast %42 : vector<1x128xf32> to vector<128xf32>
    %44 = vector.shape_cast %41 : vector<128xf32> to vector<1x128xf32>
    tpu.vector_store %arg3[%c3, %c0_10], %44 {strides = array<i32>} : memref<8x128xf32, #tpu.memory_space<vmem>>, vector<1x128xf32>,
    %c4_i32 = arith.constant 4 : i32
    %45 = arith.addi %0, %c4_i32 : i32
    %46 = arith.index_cast %45 : i32 to index
    %47 = memref.load %arg1[%46] : memref<16xi32, #tpu.memory_space<smem>>
    %48 = arith.index_cast %47 : i32 to index
    %c0_11 = arith.constant 0 : index
    %49 = vector.load %arg2[%48, %c0_11] : memref<32x128xf32, #tpu.memory_space<vmem>>, vector<1x128xf32>
    %50 = vector.shape_cast %49 : vector<1x128xf32> to vector<128xf32>
    %cst_12 = arith.constant 11.3137083 : f32
    %51 = vector.broadcast %cst_12 : f32 to vector<128xf32>
    %52 = arith.mulf %50, %51 : vector<128xf32>
    %c4 = arith.constant 4 : index
    %c0_13 = arith.constant 0 : index
    %53 = vector.load %arg3[%c4, %c0_13] : memref<8x128xf32, #tpu.memory_space<vmem>>, vector<1x128xf32>
    %54 = vector.shape_cast %53 : vector<1x128xf32> to vector<128xf32>
    %55 = vector.shape_cast %52 : vector<128xf32> to vector<1x128xf32>
    tpu.vector_store %arg3[%c4, %c0_13], %55 {strides = array<i32>} : memref<8x128xf32, #tpu.memory_space<vmem>>, vector<1x128xf32>,
    %c5_i32 = arith.constant 5 : i32
    %56 = arith.addi %0, %c5_i32 : i32
    %57 = arith.index_cast %56 : i32 to index
    %58 = memref.load %arg1[%57] : memref<16xi32, #tpu.memory_space<smem>>
    %59 = arith.index_cast %58 : i32 to index
    %c0_14 = arith.constant 0 : index
    %60 = vector.load %arg2[%59, %c0_14] : memref<32x128xf32, #tpu.memory_space<vmem>>, vector<1x128xf32>
    %61 = vector.shape_cast %60 : vector<1x128xf32> to vector<128xf32>
    %cst_15 = arith.constant 11.3137083 : f32
    %62 = vector.broadcast %cst_15 : f32 to vector<128xf32>
    %63 = arith.mulf %61, %62 : vector<128xf32>
    %c5 = arith.constant 5 : index
    %c0_16 = arith.constant 0 : index
    %64 = vector.load %arg3[%c5, %c0_16] : memref<8x128xf32, #tpu.memory_space<vmem>>, vector<1x128xf32>
    %65 = vector.shape_cast %64 : vector<1x128xf32> to vector<128xf32>
    %66 = vector.shape_cast %63 : vector<128xf32> to vector<1x128xf32>
    tpu.vector_store %arg3[%c5, %c0_16], %66 {strides = array<i32>} : memref<8x128xf32, #tpu.memory_space<vmem>>, vector<1x128xf32>,
    %c6_i32 = arith.constant 6 : i32
    %67 = arith.addi %0, %c6_i32 : i32
    %68 = arith.index_cast %67 : i32 to index
    %69 = memref.load %arg1[%68] : memref<16xi32, #tpu.memory_space<smem>>
    %70 = arith.index_cast %69 : i32 to index
    %c0_17 = arith.constant 0 : index
    %71 = vector.load %arg2[%70, %c0_17] : memref<32x128xf32, #tpu.memory_space<vmem>>, vector<1x128xf32>
    %72 = vector.shape_cast %71 : vector<1x128xf32> to vector<128xf32>
    %cst_18 = arith.constant 11.3137083 : f32
    %73 = vector.broadcast %cst_18 : f32 to vector<128xf32>
    %74 = arith.mulf %72, %73 : vector<128xf32>
    %c6 = arith.constant 6 : index
    %c0_19 = arith.constant 0 : index
    %75 = vector.load %arg3[%c6, %c0_19] : memref<8x128xf32, #tpu.memory_space<vmem>>, vector<1x128xf32>
    %76 = vector.shape_cast %75 : vector<1x128xf32> to vector<128xf32>
    %77 = vector.shape_cast %74 : vector<128xf32> to vector<1x128xf32>
    tpu.vector_store %arg3[%c6, %c0_19], %77 {strides = array<i32>} : memref<8x128xf32, #tpu.memory_space<vmem>>, vector<1x128xf32>,
    %c7_i32 = arith.constant 7 : i32
    %78 = arith.addi %0, %c7_i32 : i32
    %79 = arith.index_cast %78 : i32 to index
    %80 = memref.load %arg1[%79] : memref<16xi32, #tpu.memory_space<smem>>
    %81 = arith.index_cast %80 : i32 to index
    %c0_20 = arith.constant 0 : index
    %82 = vector.load %arg2[%81, %c0_20] : memref<32x128xf32, #tpu.memory_space<vmem>>, vector<1x128xf32>
    %83 = vector.shape_cast %82 : vector<1x128xf32> to vector<128xf32>
    %cst_21 = arith.constant 11.3137083 : f32
    %84 = vector.broadcast %cst_21 : f32 to vector<128xf32>
    %85 = arith.mulf %83, %84 : vector<128xf32>
    %c7 = arith.constant 7 : index
    %c0_22 = arith.constant 0 : index
    %86 = vector.load %arg3[%c7, %c0_22] : memref<8x128xf32, #tpu.memory_space<vmem>>, vector<1x128xf32>
    %87 = vector.shape_cast %86 : vector<1x128xf32> to vector<128xf32>
    %88 = vector.shape_cast %85 : vector<128xf32> to vector<1x128xf32>
    tpu.vector_store %arg3[%c7, %c0_22], %88 {strides = array<i32>} : memref<8x128xf32, #tpu.memory_space<vmem>>, vector<1x128xf32>,
    return
  }
  func.func @transform_0(%arg0: i32, %arg1: memref<16xi32, #tpu.memory_space<smem>>) -> (i32, i32) {
    %c0_i32 = arith.constant 0 : i32
    %c0_i32_0 = arith.constant 0 : i32
    %c0_i32_1 = arith.constant 0 : i32
    return %c0_i32, %c0_i32_0 : i32, i32
  }
  func.func @transform_1(%arg0: i32, %arg1: memref<16xi32, #tpu.memory_space<smem>>) -> (i32, i32) {
    %c0_i32 = arith.constant 0 : i32
    %c0_i32_0 = arith.constant 0 : i32
    return %arg0, %c0_i32 : i32, i32
  }
}

</mosaic_0001>

<llo_original>
// kernel: tpu_custom_call.1
$region0: #{tpu_custom_call.1}
  #allocation0 [shape = 'u32[]', space=smem, size = 0x4, offset = 0x4, fixed_abs, tag = 'smem constant byte address 0x4 - core index']
  #allocation1 [shape = 'u32[144,128]{1,0:T(1,128)}', space=vmem, size = 0x12000, scoped, tag = 'internal scratch']
  #allocation2 [shape = 's32[1]{0}', space=sflag, size = 0x4, scoped, tag = 'scoped memory for tpu_custom_call.1']
  #allocation3 [shape = 'u8[512]{0}', space=smem, size = 0x200, scoped, tag = 'prefetched SMEM operand 0']
  %s0 = inlined_call_operand.hbm [shape: s32[16], index: 0, kind: input, shape index: {}]
  %s1 = inlined_call_operand.hbm [shape: f32[32,128], index: 1, kind: input, shape index: {}]
  %s2 = inlined_call_operand.hbm [shape: f32[16,128], index: 2, kind: output, shape index: {}]
  %s3 = sld [smem:[#allocation0]]
  $region41: #{tpu_custom_call.1} parent=0
    _
  %s5 = ssub.s32 1, %s3
  %s6 = scalar_select 0, %s5, %s3
  %8 = dma.hbm_to_smem %s0, 16, [#allocation3], [#allocation2]
  %9 = dma.done [#allocation2], 16
  %10 = sfence
  $region1: #{tpu_custom_call.1} parent=0
    #allocation4 [shape = 'u8[16384]{0}', space=vmem, size = 0x4000, scoped, tag = 'input window, operand 1, single buffered']
    #allocation5 [shape = 's32[2]{0}', space=sflag, size = 0x8, scoped, tag = 'scoped memory for tpu_custom_call.1']
    #allocation6 [shape = 's32[2]{0}', space=sflag, size = 0x8, scoped, tag = 'scoped memory for tpu_custom_call.1']
    #allocation7 [shape = 'u8[8192]{0}', space=vmem, size = 0x2000, scoped, tag = 'output window, operand 0']
    %11 = vsyncpa [#allocation5], 0
    %12 = vsyncpa [#allocation6], 0
    %s13 = scalar_lea.sflag [#allocation6], 1
    %14 = vsyncpa %s13, 0
    loop: start=0, step=1, limit=4
    $region2: #{tpu_custom_call.1} parent=1 // loop_pre_header
      _
    $region3: #{tpu_custom_call.1} parent=1 // loop_header
      %s16 = sphi 0, %s20
      %p17 = scmp.ge.s32.totalorder %s16, 4
      %s24 = sphi 0, %s24
      %s26 = sphi 0, %s24
      %s27 = sphi 0, %s26
      %s41 = sphi 0, %s27
      %s47 = sphi 0, %s49
      %s50 = sphi 0, %s47
      %s51 = sphi 0, %s50
      %s67 = sphi 0, %s51
    $region4: #{tpu_custom_call.1} parent=1 // loop_header_branch
      %19 = sbr.rel (%p17) target = $region8
    $region5: #{tpu_custom_call.1} parent=1 // loop_body
      %s21 = ssub.s32 %s16, 1
      %s22 = ssub.s32 %s16, 2
      %s23 = sadd.s32 %s16, 1
      %s25 = sadd.s32 %s24, 1
      %p28 = scmp.eq.s32.totalorder %s16, 1
      %p29 = scmp.ne.s32.totalorder %s24, %s26
      %p30 = scmp.eq.s32.totalorder %s16, 0
      %p31 = por %p29, %p30
      %p32 = scmp.ne.s32.totalorder %s24, %s26
      %p33 = scmp.eq.s32.totalorder %s21, 1
      %p34 = por %p32, %p33
      %p35 = scmp.ne.s32.totalorder %s26, %s27
      %p36 = scmp.eq.s32.totalorder %s21, 0
      %p37 = por %p35, %p36
      %p38 = scmp.ne.s32.totalorder %s26, %s27
      %p39 = scmp.eq.s32.totalorder %s22, 1
      %p40 = por %p38, %p39
      %p42 = scmp.ne.s32.totalorder %s27, %s41
      %p43 = scmp.eq.s32.totalorder %s22, 0
      %p44 = por %p42, %p43
      %s45 = ssub.s32 %s16, %s23
      %p46 = scmp.eq.s32.totalorder %s45, 0
      %s48 = sadd.s32 %s47, 1
      %s49 = scalar_select %p46, %s47, %s48
      %p52 = pneg %p46
      %p53 = scmp.eq.s32.totalorder %s16, 1
      %p54 = por %p52, %p53
      %p55 = scmp.ne.s32.totalorder %s47, %s50
      %p56 = scmp.eq.s32.totalorder %s16, 0
      %p57 = por %p55, %p56
      %p58 = scmp.ne.s32.totalorder %s47, %s50
      %p59 = scmp.eq.s32.totalorder %s21, 1
      %p60 = por %p58, %p59
      %p61 = scmp.ne.s32.totalorder %s50, %s51
      %p62 = scmp.eq.s32.totalorder %s21, 0
      %p63 = por %p61, %p62
      %p64 = scmp.ne.s32.totalorder %s50, %s51
      %p65 = scmp.eq.s32.totalorder %s22, 1
      %p66 = por %p64, %p65
      %p68 = scmp.ne.s32.totalorder %s51, %s67
      %p69 = scmp.eq.s32.totalorder %s22, 0
      %p70 = por %p68, %p69
      %p71 = scmp.le.s32.totalorder 1, %s16
      %p72 = scmp.lt.s32.totalorder %s16, 3
      %p73 = pnand %p71, %p72
      %p74 = pneg %p73
      // Predicated region
      $region9: #{tpu_custom_call.1} parent=5 // pred_check
        _
      $region10: #{tpu_custom_call.1} parent=5 // pred_check_branch
        %76 = sbr.rel (%p73) target = $region12
      $region11: #{tpu_custom_call.1} parent=5 // pred_region
        %s77 = ssub.s32 %s16, 1
        // Predicated region
        $region13: #{tpu_custom_call.1} parent=11 // pred_check
          %p78 = pneg %p37
        $region14: #{tpu_custom_call.1} parent=11 // pred_check_branch
          %80 = sbr.rel (%p78) target = $region16
        $region15: #{tpu_custom_call.1} parent=11 // pred_region
          %s82 = ssub.s32 512, 512
          %83 = vsyncadd [#allocation5], %s82
          %s84 = sshll.u32 [#allocation4], 4
          %s85 = int_to_ptr.vmem [resolvable:$true] %s84
          %90 = dma.hbm_to_vmem [thread:$0]  %s1, 512, %s85, [#allocation5], 128, 128, 8
        $region16: #{tpu_custom_call.1} parent=11 // pred_fallthru
          _
      $region12: #{tpu_custom_call.1} parent=5 // pred_fallthru
        _
      %p91 = scmp.lt.s32.totalorder %s16, 2
      // Predicated region
      $region17: #{tpu_custom_call.1} parent=5 // pred_check
        %p92 = pneg %p91
      $region18: #{tpu_custom_call.1} parent=5 // pred_check_branch
        %94 = sbr.rel (%p92) target = $region20
      $region19: #{tpu_custom_call.1} parent=5 // pred_region
        _
      $region20: #{tpu_custom_call.1} parent=5 // pred_fallthru
        _
      %p95 = scmp.le.s32.totalorder 1, %s16
      %p96 = scmp.lt.s32.totalorder %s16, 3
      %p97 = pnand %p95, %p96
      %p98 = pneg %p97
      // Predicated region
      $region21: #{tpu_custom_call.1} parent=5 // pred_check
        _
      $region22: #{tpu_custom_call.1} parent=5 // pred_check_branch
        %100 = sbr.rel (%p97) target = $region24
      $region23: #{tpu_custom_call.1} parent=5 // pred_region
        %s101 = ssub.s32 %s16, 1
        // Predicated region
        $region25: #{tpu_custom_call.1} parent=23 // pred_check
          %p102 = pneg %p37
        $region26: #{tpu_custom_call.1} parent=23 // pred_check_branch
          %104 = sbr.rel (%p102) target = $region28
        $region27: #{tpu_custom_call.1} parent=23 // pred_region
          %105 = dma.done [#allocation5], 512
        $region28: #{tpu_custom_call.1} parent=23 // pred_fallthru
          _
        %p106 = pneg %p37
        %p107 = pneg %p34
        %p108 = pneg %p63
        %p109 = pneg %p60
        %s110 = sand.u32 %s50, 1
        %s111 = scalar_lea.sflag [#allocation6], %s110
        %s112 = sand.u32 %s50, 1
        %s113 = smul.addr %s112, 8
        %s114 = scalar_lea.vmem [#allocation7], %s113
        %s115 = smul.u32 %s21, 8
        %s116 = sld [smem:[#allocation3 + %s115]]
        %s117 = scalar_lea.vmem [#allocation4], %s116
        %v118 = vld [vmem:[%s117] sm:$0x1]
        %v119 = vmul.f32 %v118, 11.313708
        %120 = vst [vmem:[%s114] sm:$0x1] %v119
        %s121 = sadd.s32 %s115, 1
        %s122 = sld [smem:[#allocation3 + %s121]]
        %s123 = scalar_lea.vmem [#allocation4], %s122
        %v124 = vld [vmem:[%s123] sm:$0x1]
        %v125 = vmul.f32 %v124, 11.313708
        %126 = vst [vmem:[%s114 + $0x1] sm:$0x1] %v125
        %s127 = sadd.s32 %s115, 2
        %s128 = sld [smem:[#allocation3 + %s127]]
        %s129 = scalar_lea.vmem [#allocation4], %s128
        %v130 = vld [vmem:[%s129] sm:$0x1]
        %v131 = vmul.f32 %v130, 11.313708
        %132 = vst [vmem:[%s114 + $0x2] sm:$0x1] %v131
        %s133 = sadd.s32 %s115, 3
        %s134 = sld [smem:[#allocation3 + %s133]]
        %s135 = scalar_lea.vmem [#allocation4], %s134
        %v136 = vld [vmem:[%s135] sm:$0x1]
        %v137 = vmul.f32 %v136, 11.313708
        %138 = vst [vmem:[%s114 + $0x3] sm:$0x1] %v137
        %s139 = sadd.s32 %s115, 4
        %s140 = sld [smem:[#allocation3 + %s139]]
        %s141 = scalar_lea.vmem [#allocation4], %s140
        %v142 = vld [vmem:[%s141] sm:$0x1]
        %v143 = vmul.f32 %v142, 11.313708
        %144 = vst [vmem:[%s114 + $0x4] sm:$0x1] %v143
        %s145 = sadd.s32 %s115, 5
        %s146 = sld [smem:[#allocation3 + %s145]]
        %s147 = scalar_lea.vmem [#allocation4], %s146
        %v148 = vld [vmem:[%s147] sm:$0x1]
        %v149 = vmul.f32 %v148, 11.313708
        %150 = vst [vmem:[%s114 + $0x5] sm:$0x1] %v149
        %s151 = sadd.s32 %s115, 6
        %s152 = sld [smem:[#allocation3 + %s151]]
        %s153 = scalar_lea.vmem [#allocation4], %s152
        %v154 = vld [vmem:[%s153] sm:$0x1]
        %v155 = vmul.f32 %v154, 11.313708
        %156 = vst [vmem:[%s114 + $0x6] sm:$0x1] %v155
        %s157 = sadd.s32 %s115, 7
        %s158 = sld [smem:[#allocation3 + %s157]]
        %s159 = scalar_lea.vmem [#allocation4], %s158
        %v160 = vld [vmem:[%s159] sm:$0x1]
        %v161 = vmul.f32 %v160, 11.313708
        %162 = vst [vmem:[%s114 + $0x7] sm:$0x1] %v161
        %s163 = sand.u32 %s50, 1
        %s164 = scalar_lea.sflag [#allocation6], %s163
        %s165 = sand.u32 %s50, 1
        %s166 = smul.addr %s165, 8
        %s167 = scalar_lea.vmem [#allocation7], %s166
        // Predicated region
        $region29: #{tpu_custom_call.1} parent=23 // pred_check
          %p168 = pneg %p60
        $region30: #{tpu_custom_call.1} parent=23 // pred_check_branch
          %170 = sbr.rel (%p168) target = $region32
        $region31: #{tpu_custom_call.1} parent=23 // pred_region
          %s172 = ssub.s32 128, 128
          %173 = vsyncadd %s164, %s172
          %s174 = smul.addr %s21, 128
          %s175 = scalar_lea.hbm %s2, %s174
          %s177 = sshll.u32 %s167, 4
          %s178 = int_to_ptr.vmem [resolvable:$true] %s177
          %180 = dma.vmem_to_hbm [thread:$0]  %s178, 128, %s175, %s164
        $region32: #{tpu_custom_call.1} parent=23 // pred_fallthru
          _
      $region24: #{tpu_custom_call.1} parent=5 // pred_fallthru
        _
      %p181 = scmp.le.s32.totalorder 2, %s16
      // Predicated region
      $region33: #{tpu_custom_call.1} parent=5 // pred_check
        %p182 = pneg %p181
      $region34: #{tpu_custom_call.1} parent=5 // pred_check_branch
        %184 = sbr.rel (%p182) target = $region36
      $region35: #{tpu_custom_call.1} parent=5 // pred_region
        %s185 = ssub.s32 %s16, 2
        // Predicated region
        $region37: #{tpu_custom_call.1} parent=35 // pred_check
          %p186 = pneg %p66
        $region38: #{tpu_custom_call.1} parent=35 // pred_check_branch
          %188 = sbr.rel (%p186) target = $region40
        $region39: #{tpu_custom_call.1} parent=35 // pred_region
          %s189 = sand.u32 %s51, 1
          %s190 = scalar_lea.sflag [#allocation6], %s189
          %s191 = sand.u32 %s51, 1
          %s192 = smul.addr %s191, 8
          %s193 = scalar_lea.vmem [#allocation7], %s192
          %194 = dma.done %s190, 128
        $region40: #{tpu_custom_call.1} parent=35 // pred_fallthru
          _
      $region36: #{tpu_custom_call.1} parent=5 // pred_fallthru
        _
    $region6: #{tpu_custom_call.1} parent=1 // loop_footer
      %s20 = sadd.s32 1, %s16
    $region7: #{tpu_custom_call.1} parent=1 // loop_footer_branch
      %15 = sbr.rel target = $region3
    $region8: #{tpu_custom_call.1} parent=1 // loop_exit
      _
    %195 = vsyncpa [#allocation5], 1
    %s196 = scalar_lea.sflag [#allocation5], 1
    %197 = vsyncpa %s196, 1
    %198 = vsyncpa [#allocation6], 1
    %s199 = scalar_lea.sflag [#allocation6], 1
    %200 = vsyncpa %s199, 1

</llo_original>
